<compile_context>
chip_gen: v6e
topology: v6e:2x2x1
jax: 0.10.0
libtpu: 0.0.40
codegen_flags: <defaults>
</compile_context>

<pallas_src>
import functools

import jax
import jax.numpy as jnp
from jax import lax
from jax.experimental import pallas as pl
from jax.experimental.pallas import tpu as pltpu


def _round_up(a, b):
    return (a + b - 1) // b * b


def _vmem_capacity_bytes():
    """Physical per-core VMEM; conservative fallback if the query is unavailable."""
    try:
        cap = int(getattr(pltpu.get_tpu_info(), "vmem_capacity_bytes", 0))
    except Exception:
        cap = 0
    return cap if cap > 0 else (64 << 20)   # v7x has the smallest physical VMEM


def _make_conv_bn_kernel(cin, cout, use_mxu):
    """Fused 1x1 conv (+ folded BN) over a lane-dense spatial tile.

    p_ref: (1, Cin, TS)   pooled activations (compute dtype)
    w_ref: (Cout, Cin)    conv weight with BN scale folded in (compute dtype)
    b_ref: (Cout, 1)      folded BN bias (f32)
    o_ref: (1, Cout, TS)
    """
    def kernel(p_ref, w_ref, b_ref, o_ref):
        p = p_ref[0]                                   # (Cin, TS)
        w = w_ref[...]                                 # (Cout, Cin)
        if use_mxu:
            y = jnp.dot(w, p, preferred_element_type=jnp.float32)
        else:
            # Small channel counts: Cin VPU fmas beat a tiny-K MXU matmul.
            pf = p.astype(jnp.float32)
            wf = w.astype(jnp.float32)
            y = wf[:, 0:1] * pf[0:1, :]
            for ci in range(1, cin):
                y = y + wf[:, ci:ci + 1] * pf[ci:ci + 1, :]
        o_ref[0] = (y + b_ref[...]).astype(o_ref.dtype)

    return kernel


def transport_downsample(x_nchw, conv_w, bn_gamma, bn_beta, bn_mean, bn_var,
                         level_diff, eps=1e-5,
                         compute_dtype=jnp.float32, out_dtype=jnp.float32):
    """Forward pass of TransportDownsample (eval-mode BN).

    Args:
      x_nchw: [N, Cin, H, W] (PyTorch NCHW convention).
      conv_w: [Cout, Cin, 1, 1] 1x1-conv weight (PyTorch layout, bias=False).
      bn_*:   [Cout] BatchNorm2d parameters / running stats (eval mode).
      compute_dtype: jnp.bfloat16 recommended on v6e/v7x (f32 accumulation is kept);
                     keep f32 on v5e if its non-bf16 VPU becomes the binding slot.
    Returns:
      [N, Cout, H // 2**level_diff, W // 2**level_diff] in out_dtype.
    """
    k = 2 ** level_diff
    N, Cin, H, W = x_nchw.shape
    Cout = conv_w.shape[0]
    Hp, Wp = H // k, W // k       # MaxPool2d default ceil_mode=False drops remainders
    S = Hp * Wp

    # ---- MaxPool2d: one XLA reduce_window (reads x once, writes x/k^2) -----------
    x = x_nchw.astype(compute_dtype)
    if k > 1:
        pooled = lax.reduce_window(
            x, jnp.asarray(-jnp.inf, compute_dtype), lax.max,
            window_dimensions=(1, 1, k, k), window_strides=(1, 1, k, k),
            padding="VALID")
    else:
        pooled = x
    pooled = pooled.reshape(N, Cin, S)             # free reshape: flatten spatial

    # ---- fold eval-mode BN into the 1x1 conv weight + bias ------------------------
    scale = bn_gamma / jnp.sqrt(bn_var + eps)                         # (Cout,)
    w = (conv_w.reshape(Cout, Cin) * scale[:, None]).astype(compute_dtype)
    b = (bn_beta - bn_mean * scale).reshape(Cout, 1).astype(jnp.float32)

    # ---- spatial tile: sized purely from a per-generation VMEM budget ------------
    in_elt = jnp.dtype(compute_dtype).itemsize
    out_elt = jnp.dtype(out_dtype).itemsize
    cap = _vmem_capacity_bytes()
    vmem_limit = min(int(cap * 0.9), 120 << 20)     # explicit limit (v5e default=16MiB)
    budget = int(cap * 0.45)                        # headroom for Mosaic scratch
    sub_in, sub_out = 32 // in_elt, 32 // out_elt   # sublane padding per dtype
    # Double-buffered input/output columns + (double-buffered) weight & bias tiles.
    per_col = 2 * (_round_up(Cin, sub_in) * in_elt + _round_up(Cout, sub_out) * out_elt)
    fixed = 2 * (_round_up(Cout, sub_in) * _round_up(Cin, 128) * in_elt
                 + _round_up(Cout, 8) * 128 * 4)
    ts_cap = max(128, (budget - fixed) // per_col)
    if S <= ts_cap:
        ts = S                                      # block == full dim: always legal
    else:
        ts = (ts_cap // 128) * 128                  # lane-dense (multiple of 128)
    # v7x megacore: guarantee >= 2 "parallel" grid steps when there is enough work.
    if N * pl.cdiv(S, ts) < 2 and S >= 256:
        ts = _round_up(pl.cdiv(S, 2), 128)

    grid = (N, pl.cdiv(S, ts))
    out = pl.pallas_call(
        _make_conv_bn_kernel(Cin, Cout, use_mxu=(Cin * Cout >= 256)),
        out_shape=jax.ShapeDtypeStruct((N, Cout, S), out_dtype),
        grid_spec=pltpu.PrefetchScalarGridSpec(
            num_scalar_prefetch=0,
            grid=grid,
            in_specs=[
                pl.BlockSpec((1, Cin, ts), lambda n, s: (n, 0, s)),
                pl.BlockSpec((Cout, Cin), lambda n, s: (0, 0)),
                pl.BlockSpec((Cout, 1), lambda n, s: (0, 0)),
            ],
            out_specs=pl.BlockSpec((1, Cout, ts), lambda n, s: (n, 0, s)),
        ),
        compiler_params=pltpu.CompilerParams(
            dimension_semantics=("parallel", "parallel"),
            vmem_limit_bytes=vmem_limit),
    )(pooled, w, b)

    # ---- free reshape back to NCHW ------------------------------------------------
    return out.reshape(N, Cout, Hp, Wp)


def _reference(x_nchw, conv_w, bn_gamma, bn_beta, bn_mean, bn_var,
               level_diff, eps=1e-5):
    """Pure-JAX reference mirroring the PyTorch module (eval-mode BN)."""
    k = 2 ** level_diff
    pooled = lax.reduce_window(
        x_nchw, -jnp.inf, lax.max,
        window_dimensions=(1, 1, k, k),
        window_strides=(1, 1, k, k),
        padding="VALID")
    w = conv_w.reshape(conv_w.shape[0], conv_w.shape[1])   # (Cout, Cin)
    y = jnp.einsum("nchw,oc->nohw", pooled, w)
    scale = bn_gamma / jnp.sqrt(bn_var + eps)
    bias = bn_beta - bn_mean * scale
    return y * scale[None, :, None, None] + bias[None, :, None, None]


if __name__ == "__main__":
    level_diff = 1
    N, Cin, H, W = 2, 4, 16, 16
    Cout = 8

    key = jax.random.PRNGKey(0)
    kx, kw, kg, kb, km, kv = jax.random.split(key, 6)
    x = jax.random.normal(kx, (N, Cin, H, W), dtype=jnp.float32)
    conv_w = jax.random.normal(kw, (Cout, Cin, 1, 1), dtype=jnp.float32) * 0.1
    bn_gamma = 1.0 + 0.1 * jax.random.normal(kg, (Cout,), dtype=jnp.float32)
    bn_beta = 0.1 * jax.random.normal(kb, (Cout,), dtype=jnp.float32)
    bn_mean = 0.1 * jax.random.normal(km, (Cout,), dtype=jnp.float32)
    bn_var = jnp.abs(jax.random.normal(kv, (Cout,), dtype=jnp.float32)) + 0.5

    ref = _reference(x, conv_w, bn_gamma, bn_beta, bn_mean, bn_var, level_diff)

    # f32 path (exact vs. the reference).
    fn = jax.jit(functools.partial(transport_downsample, level_diff=level_diff))
    out = jax.block_until_ready(fn(x, conv_w, bn_gamma, bn_beta, bn_mean, bn_var))
    assert out.shape == (N, Cout, H // 2 ** level_diff, W // 2 ** level_diff)
    assert jnp.allclose(out, ref, atol=1e-5, rtol=1e-5), "f32 mismatch vs reference"

    # bf16 compute path (recommended on v6e/v7x) — sanity check at bf16 tolerance.
    fn_bf16 = jax.jit(functools.partial(
        transport_downsample, level_diff=level_diff, compute_dtype=jnp.bfloat16))
    out_bf16 = jax.block_until_ready(
        fn_bf16(x, conv_w, bn_gamma, bn_beta, bn_mean, bn_var))
    assert jnp.allclose(out_bf16, ref, atol=1e-1, rtol=1e-1), "bf16 sanity mismatch"

    print("KERNEL_OK")
</pallas_src>

<mosaic_0001>
module attributes {stable_mosaic.version = 11 : i64} {
  func.func @kernel(%arg0: i32, %arg1: i32, %arg2: memref<1x4x64xf32, #tpu.memory_space<vmem>>, %arg3: memref<8x4xf32, #tpu.memory_space<vmem>>, %arg4: memref<8x1xf32, #tpu.memory_space<vmem>>, %arg5: memref<1x8x64xf32, #tpu.memory_space<vmem>>) attributes {dimension_semantics = [#tpu.dimension_semantics<parallel>, #tpu.dimension_semantics<parallel>], iteration_bounds = array<i64: 2, 1>, scalar_prefetch = 0 : i64, scratch_operands = 0 : i64, tpu.core_type = #tpu.core_type<tc>, window_params = [{transform_indices = @transform_0, window_bounds = array<i64: 1, 4, 64>}, {pipeline_mode = #tpu.pipeline_mode<synchronous>, transform_indices = @transform_1, window_bounds = array<i64: 8, 4>}, {pipeline_mode = #tpu.pipeline_mode<synchronous>, transform_indices = @transform_2, window_bounds = array<i64: 8, 1>}, {transform_indices = @transform_3, window_bounds = array<i64: 1, 8, 64>}]} {
    %c0 = arith.constant 0 : index
    %c0_0 = arith.constant 0 : index
    %c0_1 = arith.constant 0 : index
    %0 = vector.load %arg2[%c0, %c0_0, %c0_1] : memref<1x4x64xf32, #tpu.memory_space<vmem>>, vector<1x4x64xf32>
    %1 = vector.shape_cast %0 : vector<1x4x64xf32> to vector<4x64xf32>
    %c0_2 = arith.constant 0 : index
    %c0_3 = arith.constant 0 : index
    %2 = vector.load %arg3[%c0_2, %c0_3] : memref<8x4xf32, #tpu.memory_space<vmem>>, vector<8x4xf32>
    %3 = vector.extract_strided_slice %2 {offsets = [0, 0], sizes = [8, 1], strides = [1, 1]} : vector<8x4xf32> to vector<8x1xf32>
    %4 = vector.extract_strided_slice %1 {offsets = [0, 0], sizes = [1, 64], strides = [1, 1]} : vector<4x64xf32> to vector<1x64xf32>
    %5 = vector.broadcast %3 : vector<8x1xf32> to vector<8x64xf32>
    %6 = vector.broadcast %4 : vector<1x64xf32> to vector<8x64xf32>
    %7 = arith.mulf %5, %6 : vector<8x64xf32>
    %8 = vector.extract_strided_slice %2 {offsets = [0, 1], sizes = [8, 1], strides = [1, 1]} : vector<8x4xf32> to vector<8x1xf32>
    %9 = vector.extract_strided_slice %1 {offsets = [1, 0], sizes = [1, 64], strides = [1, 1]} : vector<4x64xf32> to vector<1x64xf32>
    %10 = vector.broadcast %8 : vector<8x1xf32> to vector<8x64xf32>
    %11 = vector.broadcast %9 : vector<1x64xf32> to vector<8x64xf32>
    %12 = arith.mulf %10, %11 : vector<8x64xf32>
    %13 = arith.addf %7, %12 : vector<8x64xf32>
    %14 = vector.extract_strided_slice %2 {offsets = [0, 2], sizes = [8, 1], strides = [1, 1]} : vector<8x4xf32> to vector<8x1xf32>
    %15 = vector.extract_strided_slice %1 {offsets = [2, 0], sizes = [1, 64], strides = [1, 1]} : vector<4x64xf32> to vector<1x64xf32>
    %16 = vector.broadcast %14 : vector<8x1xf32> to vector<8x64xf32>
    %17 = vector.broadcast %15 : vector<1x64xf32> to vector<8x64xf32>
    %18 = arith.mulf %16, %17 : vector<8x64xf32>
    %19 = arith.addf %13, %18 : vector<8x64xf32>
    %20 = vector.extract_strided_slice %2 {offsets = [0, 3], sizes = [8, 1], strides = [1, 1]} : vector<8x4xf32> to vector<8x1xf32>
    %21 = vector.extract_strided_slice %1 {offsets = [3, 0], sizes = [1, 64], strides = [1, 1]} : vector<4x64xf32> to vector<1x64xf32>
    %22 = vector.broadcast %20 : vector<8x1xf32> to vector<8x64xf32>
    %23 = vector.broadcast %21 : vector<1x64xf32> to vector<8x64xf32>
    %24 = arith.mulf %22, %23 : vector<8x64xf32>
    %25 = arith.addf %19, %24 : vector<8x64xf32>
    %c0_4 = arith.constant 0 : index
    %c0_5 = arith.constant 0 : index
    %26 = vector.load %arg4[%c0_4, %c0_5] : memref<8x1xf32, #tpu.memory_space<vmem>>, vector<8x1xf32>
    %27 = vector.broadcast %26 : vector<8x1xf32> to vector<8x64xf32>
    %28 = arith.addf %25, %27 : vector<8x64xf32>
    %c0_6 = arith.constant 0 : index
    %c0_7 = arith.constant 0 : index
    %c0_8 = arith.constant 0 : index
    %29 = vector.load %arg5[%c0_6, %c0_7, %c0_8] : memref<1x8x64xf32, #tpu.memory_space<vmem>>, vector<1x8x64xf32>
    %30 = vector.shape_cast %29 : vector<1x8x64xf32> to vector<8x64xf32>
    %31 = vector.shape_cast %28 : vector<8x64xf32> to vector<1x8x64xf32>
    tpu.vector_store %arg5[%c0_6, %c0_7, %c0_8], %31 {strides = array<i32>} : memref<1x8x64xf32, #tpu.memory_space<vmem>>, vector<1x8x64xf32>,
    return
  }
  func.func @transform_0(%arg0: i32, %arg1: i32) -> (i32, i32, i32) {
    %c0_i32 = arith.constant 0 : i32
    %c0_i32_0 = arith.constant 0 : i32
    return %arg0, %c0_i32, %arg1 : i32, i32, i32
  }
  func.func @transform_1(%arg0: i32, %arg1: i32) -> (i32, i32) {
    %c0_i32 = arith.constant 0 : i32
    %c0_i32_0 = arith.constant 0 : i32
    %c0_i32_1 = arith.constant 0 : i32
    return %c0_i32, %c0_i32_0 : i32, i32
  }
  func.func @transform_2(%arg0: i32, %arg1: i32) -> (i32, i32) {
    %c0_i32 = arith.constant 0 : i32
    %c0_i32_0 = arith.constant 0 : i32
    %c0_i32_1 = arith.constant 0 : i32
    return %c0_i32, %c0_i32_0 : i32, i32
  }
  func.func @transform_3(%arg0: i32, %arg1: i32) -> (i32, i32, i32) {
    %c0_i32 = arith.constant 0 : i32
    %c0_i32_0 = arith.constant 0 : i32
    return %arg0, %c0_i32, %arg1 : i32, i32, i32
  }
}

</mosaic_0001>

<llo_original>
// kernel: transport_downsample.1
$region0: #{transport_downsample.1}
  #allocation0 [shape = 'u32[]', space=smem, size = 0x4, offset = 0x4, fixed_abs, tag = 'smem constant byte address 0x4 - core index']
  #allocation1 [shape = 'u32[144,128]{1,0:T(1,128)}', space=vmem, size = 0x12000, scoped, tag = 'internal scratch']
  %s0 = inlined_call_operand.vmem [shape: f32[2,4,64], index: 0, kind: input, shape index: {}]
  %s1 = inlined_call_operand.vmem [shape: f32[8,4], index: 1, kind: input, shape index: {}]
  %s2 = inlined_call_operand.vmem [shape: f32[8,1], index: 2, kind: input, shape index: {}]
  %s3 = inlined_call_operand.vmem [shape: f32[2,8,64], index: 3, kind: output, shape index: {}]
  %s4 = sld [smem:[#allocation0]]
  $region45: #{transport_downsample.1} parent=0
    _
  %s6 = ssub.s32 1, %s4
  %s7 = scalar_select 0, %s6, %s4
  loop: start=0, step=1, limit=4
  $region2: #{transport_downsample.1} parent=0 // loop_pre_header
    _
  $region3: #{transport_downsample.1} parent=0 // loop_header
    %s9 = sphi 0, %s13
    %p10 = scmp.ge.s32.totalorder %s9, 4
    %s16 = sphi 0, %s28
    %s17 = sphi 0, %s24
    %s18 = sphi 0, %s16
    %s19 = sphi 0, %s17
    %s20 = sphi 0, %s18
    %s21 = sphi 0, %s19
    %s33 = sphi 0, %s35
    %s36 = sphi 0, %s33
    %s37 = sphi 0, %s36
    %s53 = sphi 0, %s37
    %s57 = sphi 0, %s57
    %s59 = sphi 0, %s57
    %s60 = sphi 0, %s59
    %s74 = sphi 0, %s60
    %s78 = sphi 0, %s78
    %s80 = sphi 0, %s78
    %s81 = sphi 0, %s80
    %s95 = sphi 0, %s81
    %s103 = sphi 0, %s105
    %s106 = sphi 0, %s103
    %s107 = sphi 0, %s106
    %s123 = sphi 0, %s107
  $region4: #{transport_downsample.1} parent=0 // loop_header_branch
    %12 = sbr.rel (%p10) target = $region8
  $region5: #{transport_downsample.1} parent=0 // loop_body
    %s14 = ssub.s32 %s9, 1
    %s15 = ssub.s32 %s9, 2
    %s22 = sadd.s32 1, %s17
    %p23 = scmp.ge.s32.totalorder %s22, 1
    %s24 = scalar_select %p23, 0, %s22
    %s25 = sadd.s32 1, %s16
    %s26 = scalar_select %p23, %s25, %s16
    %p27 = scmp.ge.s32.totalorder %s26, 2
    %s28 = scalar_select %p27, 0, %s26
    %s29 = ssub.s32 %s16, %s28
    %s30 = ssub.s32 %s17, %s24
    %s31 = sor.u32 %s29, %s30
    %p32 = scmp.eq.s32.totalorder %s31, 0
    %s34 = sadd.s32 %s33, 1
    %s35 = scalar_select %p32, %s33, %s34
    %p38 = pneg %p32
    %p39 = scmp.eq.s32.totalorder %s9, 1
    %p40 = por %p38, %p39
    %p41 = scmp.ne.s32.totalorder %s33, %s36
    %p42 = scmp.eq.s32.totalorder %s9, 0
    %p43 = por %p41, %p42
    %p44 = scmp.ne.s32.totalorder %s33, %s36
    %p45 = scmp.eq.s32.totalorder %s14, 1
    %p46 = por %p44, %p45
    %p47 = scmp.ne.s32.totalorder %s36, %s37
    %p48 = scmp.eq.s32.totalorder %s14, 0
    %p49 = por %p47, %p48
    %p50 = scmp.ne.s32.totalorder %s36, %s37
    %p51 = scmp.eq.s32.totalorder %s15, 1
    %p52 = por %p50, %p51
    %p54 = scmp.ne.s32.totalorder %s37, %s53
    %p55 = scmp.eq.s32.totalorder %s15, 0
    %p56 = por %p54, %p55
    %s58 = sadd.s32 %s57, 1
    %p61 = scmp.eq.s32.totalorder %s9, 1
    %p62 = scmp.ne.s32.totalorder %s57, %s59
    %p63 = scmp.eq.s32.totalorder %s9, 0
    %p64 = por %p62, %p63
    %p65 = scmp.ne.s32.totalorder %s57, %s59
    %p66 = scmp.eq.s32.totalorder %s14, 1
    %p67 = por %p65, %p66
    %p68 = scmp.ne.s32.totalorder %s59, %s60
    %p69 = scmp.eq.s32.totalorder %s14, 0
    %p70 = por %p68, %p69
    %p71 = scmp.ne.s32.totalorder %s59, %s60
    %p72 = scmp.eq.s32.totalorder %s15, 1
    %p73 = por %p71, %p72
    %p75 = scmp.ne.s32.totalorder %s60, %s74
    %p76 = scmp.eq.s32.totalorder %s15, 0
    %p77 = por %p75, %p76
    %s79 = sadd.s32 %s78, 1
    %p82 = scmp.eq.s32.totalorder %s9, 1
    %p83 = scmp.ne.s32.totalorder %s78, %s80
    %p84 = scmp.eq.s32.totalorder %s9, 0
    %p85 = por %p83, %p84
    %p86 = scmp.ne.s32.totalorder %s78, %s80
    %p87 = scmp.eq.s32.totalorder %s14, 1
    %p88 = por %p86, %p87
    %p89 = scmp.ne.s32.totalorder %s80, %s81
    %p90 = scmp.eq.s32.totalorder %s14, 0
    %p91 = por %p89, %p90
    %p92 = scmp.ne.s32.totalorder %s80, %s81
    %p93 = scmp.eq.s32.totalorder %s15, 1
    %p94 = por %p92, %p93
    %p96 = scmp.ne.s32.totalorder %s81, %s95
    %p97 = scmp.eq.s32.totalorder %s15, 0
    %p98 = por %p96, %p97
    %s99 = ssub.s32 %s16, %s28
    %s100 = ssub.s32 %s17, %s24
    %s101 = sor.u32 %s99, %s100
    %p102 = scmp.eq.s32.totalorder %s101, 0
    %s104 = sadd.s32 %s103, 1
    %s105 = scalar_select %p102, %s103, %s104
    %p108 = pneg %p102
    %p109 = scmp.eq.s32.totalorder %s9, 1
    %p110 = por %p108, %p109
    %p111 = scmp.ne.s32.totalorder %s103, %s106
    %p112 = scmp.eq.s32.totalorder %s9, 0
    %p113 = por %p111, %p112
    %p114 = scmp.ne.s32.totalorder %s103, %s106
    %p115 = scmp.eq.s32.totalorder %s14, 1
    %p116 = por %p114, %p115
    %p117 = scmp.ne.s32.totalorder %s106, %s107
    %p118 = scmp.eq.s32.totalorder %s14, 0
    %p119 = por %p117, %p118
    %p120 = scmp.ne.s32.totalorder %s106, %s107
    %p121 = scmp.eq.s32.totalorder %s15, 1
    %p122 = por %p120, %p121
    %p124 = scmp.ne.s32.totalorder %s107, %s123
    %p125 = scmp.eq.s32.totalorder %s15, 0
    %p126 = por %p124, %p125
    %p127 = scmp.le.s32.totalorder 1, %s9
    %p128 = scmp.lt.s32.totalorder %s9, 3
    %p129 = pnand %p127, %p128
    %p130 = pneg %p129
    // Predicated region
    $region9: #{transport_downsample.1} parent=5 // pred_check
      _
    $region10: #{transport_downsample.1} parent=5 // pred_check_branch
      %132 = sbr.rel (%p129) target = $region12
    $region11: #{transport_downsample.1} parent=5 // pred_region
      %s133 = ssub.s32 %s9, 1
      // Predicated region
      $region13: #{transport_downsample.1} parent=11 // pred_check
        %p134 = pneg %p70
      $region14: #{transport_downsample.1} parent=11 // pred_check_branch
        %136 = sbr.rel (%p134) target = $region16
      $region15: #{transport_downsample.1} parent=11 // pred_region
        _
      $region16: #{transport_downsample.1} parent=11 // pred_fallthru
        _
      // Predicated region
      $region17: #{transport_downsample.1} parent=11 // pred_check
        %p137 = pneg %p91
      $region18: #{transport_downsample.1} parent=11 // pred_check_branch
        %139 = sbr.rel (%p137) target = $region20
      $region19: #{transport_downsample.1} parent=11 // pred_region
        _
      $region20: #{transport_downsample.1} parent=11 // pred_fallthru
        _
    $region12: #{transport_downsample.1} parent=5 // pred_fallthru
      _
    %p140 = scmp.lt.s32.totalorder %s9, 2
    // Predicated region
    $region21: #{transport_downsample.1} parent=5 // pred_check
      %p141 = pneg %p140
    $region22: #{transport_downsample.1} parent=5 // pred_check_branch
      %143 = sbr.rel (%p141) target = $region24
    $region23: #{transport_downsample.1} parent=5 // pred_region
      // Predicated region
      $region25: #{transport_downsample.1} parent=23 // pred_check
        %p144 = pneg %p43
      $region26: #{transport_downsample.1} parent=23 // pred_check_branch
        %146 = sbr.rel (%p144) target = $region28
      $region27: #{transport_downsample.1} parent=23 // pred_region
        %p147 = scmp.lt.s32.totalorder %s16, 1
        %s148 = scalar_select %p147, %s16, 1
        %p149 = scmp.lt.s32.totalorder %s17, 0
        %s150 = scalar_select %p149, %s17, 0
        %s151 = sadd.s32 %s150, %s148
        %s152 = smul.addr %s151, 4
        %s153 = scalar_lea.vmem %s0, %s152
      $region28: #{transport_downsample.1} parent=23 // pred_fallthru
        _
    $region24: #{transport_downsample.1} parent=5 // pred_fallthru
      _
    %p154 = scmp.le.s32.totalorder 1, %s9
    %p155 = scmp.lt.s32.totalorder %s9, 3
    %p156 = pnand %p154, %p155
    %p157 = pneg %p156
    // Predicated region
    $region29: #{transport_downsample.1} parent=5 // pred_check
      _
    $region30: #{transport_downsample.1} parent=5 // pred_check_branch
      %159 = sbr.rel (%p156) target = $region32
    $region31: #{transport_downsample.1} parent=5 // pred_region
      %s160 = ssub.s32 %s9, 1
      %p161 = scmp.lt.s32.totalorder %s18, 1
      %s162 = scalar_select %p161, %s18, 1
      %p163 = scmp.lt.s32.totalorder %s19, 0
      %s164 = scalar_select %p163, %s19, 0
      %s165 = sadd.s32 %s164, %s162
      %s166 = smul.addr %s165, 4
      %s167 = scalar_lea.vmem %s0, %s166
      %p168 = pneg %p49
      %p169 = pneg %p46
      %p170 = pneg %p70
      %p171 = pneg %p67
      %p172 = pneg %p91
      %p173 = pneg %p88
      %p174 = pneg %p119
      %p175 = pneg %p116
      %p176 = scmp.lt.s32.totalorder %s18, 1
      %s177 = scalar_select %p176, %s18, 1
      %p178 = scmp.lt.s32.totalorder %s19, 0
      %s179 = scalar_select %p178, %s19, 0
      %s180 = sadd.s32 %s179, %s177
      %s181 = smul.addr %s180, 8
      %s182 = scalar_lea.vmem %s3, %s181
      %p183 = scmp.lt.s32.totalorder %s18, 1
      %s184 = scalar_select %p183, %s18, 1
      %p185 = scmp.lt.s32.totalorder %s19, 0
      %s186 = scalar_select %p185, %s19, 0
      %s187 = sadd.s32 %s186, %s184
      %s188 = smul.addr %s187, 4
      %s189 = scalar_lea.vmem %s0, %s188
      %p190 = scmp.lt.s32.totalorder %s18, 1
      %s191 = scalar_select %p190, %s18, 1
      %p192 = scmp.lt.s32.totalorder %s19, 0
      %s193 = scalar_select %p192, %s19, 0
      %s194 = sadd.s32 %s193, %s191
      %s195 = smul.addr %s194, 8
      %s196 = scalar_lea.vmem %s3, %s195
      %v197 = vld [vmem:[%s189] sm:$0xf]
      %v198 = vld [vmem:[%s1] sm:$0xff]
      %200 = vset.pattern.permute.xlu0 0
      %201 = vperm.xlu0 %200, %v198
      %v202 = vpop.permute.xlu0 %201
      %v204 = vlaneseq
      %v205 = vshrl.u32 %v204, 7
      %v206 = vsub.s32 0, %v205
      %v207 = vrot.slane %v197, %v206
      %v208 = vmul.f32 %v202, %v207
      %209 = vset.pattern.permute.xlu0 1
      %210 = vperm.xlu0 %209, %v198
      %v211 = vpop.permute.xlu0 %210
      %v213 = vlaneseq
      %v214 = vshrl.u32 %v213, 7
      %v215 = vsub.s32 1, %v214
      %v216 = vrot.slane %v197, %v215
      %v217 = vmul.f32 %v211, %v216
      %v218 = vadd.f32 %v208, %v217
      %219 = vset.pattern.permute.xlu0 2
      %220 = vperm.xlu0 %219, %v198
      %v221 = vpop.permute.xlu0 %220
      %v223 = vlaneseq
      %v224 = vshrl.u32 %v223, 7
      %v225 = vsub.s32 2, %v224
      %v226 = vrot.slane %v197, %v225
      %v227 = vmul.f32 %v221, %v226
      %v228 = vadd.f32 %v218, %v227
      %229 = vset.pattern.permute.xlu0 3
      %230 = vperm.xlu0 %229, %v198
      %v231 = vpop.permute.xlu0 %230
      %v233 = vlaneseq
      %v234 = vshrl.u32 %v233, 7
      %v235 = vsub.s32 3, %v234
      %v236 = vrot.slane %v197, %v235
      %v237 = vmul.f32 %v231, %v236
      %v238 = vadd.f32 %v228, %v237
      %v239 = vld [vmem:[%s2] sm:$0xff]
      %241 = vset.pattern.permute.xlu0 0
      %242 = vperm.xlu0 %241, %v239
      %v243 = vpop.permute.xlu0 %242
      %v245 = vadd.f32 %v238, %v243
      %vm246 = vcmask 523264
      %247 = vst.msk [vmem:[%s196] sm:$0xff] %vm246, %v245
      %p248 = scmp.lt.s32.totalorder %s18, 1
      %s249 = scalar_select %p248, %s18, 1
      %p250 = scmp.lt.s32.totalorder %s19, 0
      %s251 = scalar_select %p250, %s19, 0
      %s252 = sadd.s32 %s251, %s249
      %s253 = smul.addr %s252, 8
      %s254 = scalar_lea.vmem %s3, %s253
      // Predicated region
      $region33: #{transport_downsample.1} parent=31 // pred_check
        %p255 = pneg %p116
      $region34: #{transport_downsample.1} parent=31 // pred_check_branch
        %257 = sbr.rel (%p255) target = $region36
      $region35: #{transport_downsample.1} parent=31 // pred_region
        _
      $region36: #{transport_downsample.1} parent=31 // pred_fallthru
        _
    $region32: #{transport_downsample.1} parent=5 // pred_fallthru
      _
    %p258 = scmp.le.s32.totalorder 2, %s9
    // Predicated region
    $region37: #{transport_downsample.1} parent=5 // pred_check
      %p259 = pneg %p258
    $region38: #{transport_downsample.1} parent=5 // pred_check_branch
      %261 = sbr.rel (%p259) target = $region40
    $region39: #{transport_downsample.1} parent=5 // pred_region
      %s262 = ssub.s32 %s9, 2
      // Predicated region
      $region41: #{transport_downsample.1} parent=39 // pred_check
        %p263 = pneg %p122
      $region42: #{transport_downsample.1} parent=39 // pred_check_branch
        %265 = sbr.rel (%p263) target = $region44
      $region43: #{transport_downsample.1} parent=39 // pred_region
        %p266 = scmp.lt.s32.totalorder %s20, 1
        %s267 = scalar_select %p266, %s20, 1
        %p268 = scmp.lt.s32.totalorder %s21, 0
        %s269 = scalar_select %p268, %s21, 0
        %s270 = sadd.s32 %s269, %s267
        %s271 = smul.addr %s270, 8
        %s272 = scalar_lea.vmem %s3, %s271
      $region44: #{transport_downsample.1} parent=39 // pred_fallthru
        _
    $region40: #{transport_downsample.1} parent=5 // pred_fallthru
      _
  $region6: #{transport_downsample.1} parent=0 // loop_footer
    %s13 = sadd.s32 1, %s9
  $region7: #{transport_downsample.1} parent=0 // loop_footer_branch
    %8 = sbr.rel target = $region3
  $region8: #{transport_downsample.1} parent=0 // loop_exit
    _

</llo_original>
